<compile_context>
chip_gen: v7x
topology: tpu7x:2x2x1
jax: 0.10.0
libtpu: 0.0.40
codegen_flags: <defaults>
</compile_context>

<pallas_src>
import jax
import jax.numpy as jnp
from jax.experimental import pallas as pl
from jax.experimental.pallas import tpu as pltpu


def _im2col(x2d, K, Lout):
    """x2d: (Ci, L) -> (K*Ci, Lout), rows ordered tau-major (tau*Ci + c)."""
    if K == 1:
        return x2d[:, :Lout]
    return jnp.concatenate([x2d[:, t:t + Lout] for t in range(K)], axis=0)


def octconv_kernel(xh_ref, xl_ref,
                   w_h2h_ref, b_h2h_ref,
                   w_h2l_ref, b_h2l_ref,
                   w_l2l_ref, b_l2l_ref,
                   w_l2h_ref, b_l2h_ref,
                   plen_ref, up_ref,
                   yh_ref, yl_ref):
    f32 = jnp.float32
    xh = xh_ref[...]                       # (Cin, Lh)   — batch dim squeezed by grid
    xl = xl_ref[...]                       # (Cin/2, Ll)

    Lh_out = yh_ref.shape[-1]
    Ll_out = yl_ref.shape[-1]
    K_h = w_h2h_ref.shape[-1] // xh.shape[0]   # kernel taps of the high-path convs
    K_l = w_l2l_ref.shape[-1] // xl.shape[0]   # kernel taps of conv_l2l

    # ---- high output: y_h = upsample(conv_l2h(x_l)) + conv_h2h(x_h) ----------
    # low -> high: 1x1 conv == plain matmul, then nearest-x2 upsample along the
    # length via a tiny constant replication matrix (bias survives: UP columns
    # each contain exactly one 1).
    y_h = jnp.dot(w_l2h_ref[...], xl, preferred_element_type=f32) + b_l2h_ref[...]
    y_h = jnp.dot(y_h, up_ref[...], preferred_element_type=f32)
    # high -> high: one im2col contraction keeps all K taps in the MXU chain.
    stack_hh = _im2col(xh, K_h, Lh_out)                       # (Cin*K, Lh_out)
    y_h = y_h + jnp.dot(w_h2h_ref[...], stack_hh,
                        preferred_element_type=f32) + b_h2h_ref[...]
    yh_ref[...] = y_h.astype(yh_ref.dtype)

    # ---- low output: y_l = conv_h2l(avgpool2x2(x_h)) + conv_l2l(x_l) ---------
    # Channel half of the 2x2 pool is already folded into w_h2l (wrapper);
    # the length half is a single tiny (Lh, Lh/2) matmul.
    pooled = jnp.dot(xh, plen_ref[...], preferred_element_type=f32)   # (Cin, Lh/2)
    stack_hl = _im2col(pooled, K_h, Ll_out)                   # (Cin*K, Ll_out)
    y_l = jnp.dot(w_h2l_ref[...], stack_hl,
                  preferred_element_type=f32) + b_h2l_ref[...]
    stack_ll = _im2col(xl, K_l, Ll_out)                       # (Cin/2*3, Ll_out)
    y_l = y_l + jnp.dot(w_l2l_ref[...], stack_ll,
                        preferred_element_type=f32) + b_l2l_ref[...]
    yl_ref[...] = y_l.astype(yl_ref.dtype)


def octconv_pallas(x_h, x_l, params):
    (w_h2h, b_h2h, w_h2l, b_h2l, w_l2l, b_l2l, w_l2h, b_l2h) = params
    N, Cin, Lh = x_h.shape
    _, Cl, Ll = x_l.shape
    Cout, _, K = w_h2h.shape
    Chalf = Cout // 2
    Kl = w_l2l.shape[2]

    Lh_out = Lh - K + 1                 # conv_h2h output length
    Ldown = Lh // 2                     # pooled length
    Ll_out = Ldown - K + 1              # conv_h2l output length
    assert Cin % 2 == 0 and Lh % 2 == 0, "AvgPool2d(2,2) path needs even Cin, Lh"
    assert Ll - Kl + 1 == Ll_out, "low-path residual lengths must match"
    assert 2 * Ll == Lh_out, "upsampled low path must match high path length"

    f32 = jnp.float32

    # --- wrapper-side (plain JAX) weight preparation -------------------------
    def flat(w):                       # (Co, Ci, K) -> (Co, K*Ci), tau-major
        Co, Ci, Kk = w.shape
        return jnp.transpose(w, (0, 2, 1)).reshape(Co, Kk * Ci)

    w_h2h_f = flat(w_h2h)                                   # (Cout , Cin*K)
    # Fold the channel half of the 2x2 avg-pool into the h2l weights.
    w_h2l_cf = 0.5 * jnp.repeat(w_h2l, 2, axis=1)           # (Chalf, Cin, K)
    w_h2l_f = flat(w_h2l_cf)                                # (Chalf, Cin*K)
    w_l2l_f = flat(w_l2l)                                   # (Chalf, Cl*3)
    w_l2h_f = w_l2h.reshape(Cout, Cl)                       # K=1 -> plain matmul

    # Length half of the avg-pool and the nearest-x2 upsample as tiny constants.
    PLEN = 0.5 * (jnp.arange(Lh)[:, None] // 2 ==
                  jnp.arange(Ldown)[None, :]).astype(f32)   # (Lh, Lh/2)
    UP = (jnp.arange(2 * Ll)[None, :] // 2 ==
          jnp.arange(Ll)[:, None]).astype(f32)              # (Ll, 2*Ll)

    b_h2h_c = b_h2h.reshape(Cout, 1).astype(f32)
    b_h2l_c = b_h2l.reshape(Chalf, 1).astype(f32)
    b_l2l_c = b_l2l.reshape(Chalf, 1).astype(f32)
    b_l2h_c = b_l2h.reshape(Cout, 1).astype(f32)

    # --- specs ----------------------------------------------------------------
    def resident(a):  # same block every grid step -> stays VMEM-resident
        nd = a.ndim
        return pl.BlockSpec(a.shape, lambda n, _nd=nd: (0,) * _nd)

    in_specs = [
        pl.BlockSpec((None, Cin, Lh), lambda n: (n, 0, 0)),   # x_h (per-batch tile)
        pl.BlockSpec((None, Cl, Ll), lambda n: (n, 0, 0)),    # x_l (per-batch tile)
        resident(w_h2h_f), resident(b_h2h_c),
        resident(w_h2l_f), resident(b_h2l_c),
        resident(w_l2l_f), resident(b_l2l_c),
        resident(w_l2h_f), resident(b_l2h_c),
        resident(PLEN), resident(UP),
    ]
    out_specs = (
        pl.BlockSpec((None, Cout, Lh_out), lambda n: (n, 0, 0)),
        pl.BlockSpec((None, Chalf, Ll_out), lambda n: (n, 0, 0)),
    )
    out_shapes = (
        jax.ShapeDtypeStruct((N, Cout, Lh_out), x_h.dtype),
        jax.ShapeDtypeStruct((N, Chalf, Ll_out), x_h.dtype),
    )

    return pl.pallas_call(
        octconv_kernel,
        grid=(N,),
        out_shape=out_shapes,
        in_specs=in_specs,
        out_specs=out_specs,
        compiler_params=pltpu.CompilerParams(
            dimension_semantics=("parallel",),        # v7x: shard batch over 2 TCs
            vmem_limit_bytes=32 * 1024 * 1024),
    )(x_h, x_l,
      w_h2h_f, b_h2h_c, w_h2l_f, b_h2l_c,
      w_l2l_f, b_l2l_c, w_l2h_f, b_l2h_c,
      PLEN, UP)


def octconv_reference(x_h, x_l, params):
    """Plain-JAX reference reproducing the PyTorch forward exactly."""
    (w_h2h, b_h2h, w_h2l, b_h2l, w_l2l, b_l2l, w_l2h, b_l2h) = params

    def conv1d(x, w, b):
        y = jax.lax.conv_general_dilated(
            x, w, window_strides=(1,), padding="VALID",
            dimension_numbers=("NCH", "OIH", "NCH"))
        return y + b.reshape(1, -1, 1)

    N, C, L = x_h.shape
    # AvgPool2d((2,2), stride=2) on a 3-D tensor pools over dims (C, L)
    down = x_h.reshape(N, C // 2, 2, L // 2, 2).mean(axis=(2, 4))

    x_h2h = conv1d(x_h, w_h2h, b_h2h)
    x_h2l = conv1d(down, w_h2l, b_h2l)
    x_l2l = conv1d(x_l, w_l2l, b_l2l)
    x_l2h = conv1d(x_l, w_l2h, b_l2h)
    x_l2h = jnp.repeat(x_l2h, 2, axis=-1)  # Upsample(scale=2, nearest) on length
    return x_l2h + x_h2h, x_h2l + x_l2l


if __name__ == "__main__":
    key = jax.random.PRNGKey(0)
    N, Cin, Cout, K, Lh = 2, 4, 4, 5, 16
    Ll = (Lh - K + 1) // 2  # 6  (required so the residual adds are shape-consistent)

    ks = jax.random.split(key, 12)
    x_h = jax.random.normal(ks[0], (N, Cin, Lh), jnp.float32)
    x_l = jax.random.normal(ks[1], (N, Cin // 2, Ll), jnp.float32)

    def init_conv(kw, kb, co, ci, kk):
        bound = 1.0 / (ci * kk) ** 0.5
        w = jax.random.uniform(kw, (co, ci, kk), jnp.float32, -bound, bound)
        b = jax.random.uniform(kb, (co,), jnp.float32, -bound, bound)
        return w, b

    w_h2h, b_h2h = init_conv(ks[2], ks[3], Cout, Cin, K)            # conv_h2h
    w_h2l, b_h2l = init_conv(ks[4], ks[5], Cout // 2, Cin // 2, K)  # conv_h2l
    w_l2l, b_l2l = init_conv(ks[6], ks[7], Cout // 2, Cin // 2, 3)  # conv_l2l
    w_l2h, b_l2h = init_conv(ks[8], ks[9], Cout, Cin // 2, 1)       # conv_l2h
    params = (w_h2h, b_h2h, w_h2l, b_h2l, w_l2l, b_l2l, w_l2h, b_l2h)

    y_h, y_l = octconv_pallas(x_h, x_l, params)
    jax.block_until_ready((y_h, y_l))

    r_h, r_l = octconv_reference(x_h, x_l, params)
    assert jnp.allclose(y_h, r_h, atol=1e-4, rtol=1e-4), "high path mismatch"
    assert jnp.allclose(y_l, r_l, atol=1e-4, rtol=1e-4), "low path mismatch"
    print("KERNEL_OK")
</pallas_src>

<mosaic_0001>
module attributes {stable_mosaic.version = 11 : i64} {
  func.func @octconv_kernel(%arg0: i32, %arg1: memref<1x4x16xf32, #tpu.memory_space<vmem>>, %arg2: memref<1x2x6xf32, #tpu.memory_space<vmem>>, %arg3: memref<4x20xf32, #tpu.memory_space<vmem>>, %arg4: memref<4x1xf32, #tpu.memory_space<vmem>>, %arg5: memref<2x20xf32, #tpu.memory_space<vmem>>, %arg6: memref<2x1xf32, #tpu.memory_space<vmem>>, %arg7: memref<2x6xf32, #tpu.memory_space<vmem>>, %arg8: memref<2x1xf32, #tpu.memory_space<vmem>>, %arg9: memref<4x2xf32, #tpu.memory_space<vmem>>, %arg10: memref<4x1xf32, #tpu.memory_space<vmem>>, %arg11: memref<16x8xf32, #tpu.memory_space<vmem>>, %arg12: memref<6x12xf32, #tpu.memory_space<vmem>>, %arg13: memref<1x4x12xf32, #tpu.memory_space<vmem>>, %arg14: memref<1x2x4xf32, #tpu.memory_space<vmem>>) attributes {dimension_semantics = [#tpu.dimension_semantics<parallel>], iteration_bounds = array<i64: 2>, scalar_prefetch = 0 : i64, scratch_operands = 0 : i64, tpu.core_type = #tpu.core_type<tc>, window_params = [{transform_indices = @transform_0, window_bounds = array<i64: 1, 4, 16>}, {transform_indices = @transform_1, window_bounds = array<i64: 1, 2, 6>}, {pipeline_mode = #tpu.pipeline_mode<synchronous>, transform_indices = @transform_2, window_bounds = array<i64: 4, 20>}, {pipeline_mode = #tpu.pipeline_mode<synchronous>, transform_indices = @transform_3, window_bounds = array<i64: 4, 1>}, {pipeline_mode = #tpu.pipeline_mode<synchronous>, transform_indices = @transform_4, window_bounds = array<i64: 2, 20>}, {pipeline_mode = #tpu.pipeline_mode<synchronous>, transform_indices = @transform_5, window_bounds = array<i64: 2, 1>}, {pipeline_mode = #tpu.pipeline_mode<synchronous>, transform_indices = @transform_6, window_bounds = array<i64: 2, 6>}, {pipeline_mode = #tpu.pipeline_mode<synchronous>, transform_indices = @transform_7, window_bounds = array<i64: 2, 1>}, {pipeline_mode = #tpu.pipeline_mode<synchronous>, transform_indices = @transform_8, window_bounds = array<i64: 4, 2>}, {pipeline_mode = #tpu.pipeline_mode<synchronous>, transform_indices = @transform_9, window_bounds = array<i64: 4, 1>}, {pipeline_mode = #tpu.pipeline_mode<synchronous>, transform_indices = @transform_10, window_bounds = array<i64: 16, 8>}, {pipeline_mode = #tpu.pipeline_mode<synchronous>, transform_indices = @transform_11, window_bounds = array<i64: 6, 12>}, {transform_indices = @transform_12, window_bounds = array<i64: 1, 4, 12>}, {transform_indices = @transform_13, window_bounds = array<i64: 1, 2, 4>}]} {
    %c0 = arith.constant 0 : index
    %c0_0 = arith.constant 0 : index
    %c0_1 = arith.constant 0 : index
    %0 = vector.load %arg1[%c0, %c0_0, %c0_1] : memref<1x4x16xf32, #tpu.memory_space<vmem>>, vector<1x4x16xf32>
    %1 = vector.shape_cast %0 : vector<1x4x16xf32> to vector<4x16xf32>
    %c0_2 = arith.constant 0 : index
    %c0_3 = arith.constant 0 : index
    %c0_4 = arith.constant 0 : index
    %2 = vector.load %arg2[%c0_2, %c0_3, %c0_4] : memref<1x2x6xf32, #tpu.memory_space<vmem>>, vector<1x2x6xf32>
    %3 = vector.shape_cast %2 : vector<1x2x6xf32> to vector<2x6xf32>
    %c0_5 = arith.constant 0 : index
    %c0_6 = arith.constant 0 : index
    %4 = vector.load %arg9[%c0_5, %c0_6] : memref<4x2xf32, #tpu.memory_space<vmem>>, vector<4x2xf32>
    %cst = arith.constant dense<0.000000e+00> : vector<4x6xf32>
    %5 = tpu.matmul %4, %3, %cst {dimension_numbers = #tpu.dot_dimension_numbers<[1], [0], [0], [1], [0, 0, 1, 1], [], []>} : vector<4x2xf32>, vector<2x6xf32>, vector<4x6xf32> -> vector<4x6xf32>
    %c0_7 = arith.constant 0 : index
    %c0_8 = arith.constant 0 : index
    %6 = vector.load %arg10[%c0_7, %c0_8] : memref<4x1xf32, #tpu.memory_space<vmem>>, vector<4x1xf32>
    %7 = vector.broadcast %6 : vector<4x1xf32> to vector<4x6xf32>
    %8 = arith.addf %5, %7 : vector<4x6xf32>
    %c0_9 = arith.constant 0 : index
    %c0_10 = arith.constant 0 : index
    %9 = vector.load %arg12[%c0_9, %c0_10] : memref<6x12xf32, #tpu.memory_space<vmem>>, vector<6x12xf32>
    %cst_11 = arith.constant dense<0.000000e+00> : vector<4x12xf32>
    %10 = tpu.matmul %8, %9, %cst_11 {dimension_numbers = #tpu.dot_dimension_numbers<[1], [0], [0], [1], [0, 0, 1, 1], [], []>} : vector<4x6xf32>, vector<6x12xf32>, vector<4x12xf32> -> vector<4x12xf32>
    %11 = vector.extract_strided_slice %1 {offsets = [0, 0], sizes = [4, 12], strides = [1, 1]} : vector<4x16xf32> to vector<4x12xf32>
    %12 = vector.extract_strided_slice %1 {offsets = [0, 1], sizes = [4, 12], strides = [1, 1]} : vector<4x16xf32> to vector<4x12xf32>
    %13 = vector.extract_strided_slice %1 {offsets = [0, 2], sizes = [4, 12], strides = [1, 1]} : vector<4x16xf32> to vector<4x12xf32>
    %14 = vector.extract_strided_slice %1 {offsets = [0, 3], sizes = [4, 12], strides = [1, 1]} : vector<4x16xf32> to vector<4x12xf32>
    %15 = vector.extract_strided_slice %1 {offsets = [0, 4], sizes = [4, 12], strides = [1, 1]} : vector<4x16xf32> to vector<4x12xf32>
    %16 = tpu.concatenate %11, %12, %13, %14, %15 in 0 : vector<4x12xf32>, vector<4x12xf32>, vector<4x12xf32>, vector<4x12xf32>, vector<4x12xf32> -> vector<20x12xf32>
    %c0_12 = arith.constant 0 : index
    %c0_13 = arith.constant 0 : index
    %17 = vector.load %arg3[%c0_12, %c0_13] : memref<4x20xf32, #tpu.memory_space<vmem>>, vector<4x20xf32>
    %cst_14 = arith.constant dense<0.000000e+00> : vector<4x12xf32>
    %18 = tpu.matmul %17, %16, %cst_14 {dimension_numbers = #tpu.dot_dimension_numbers<[1], [0], [0], [1], [0, 0, 1, 1], [], []>} : vector<4x20xf32>, vector<20x12xf32>, vector<4x12xf32> -> vector<4x12xf32>
    %19 = arith.addf %10, %18 : vector<4x12xf32>
    %c0_15 = arith.constant 0 : index
    %c0_16 = arith.constant 0 : index
    %20 = vector.load %arg4[%c0_15, %c0_16] : memref<4x1xf32, #tpu.memory_space<vmem>>, vector<4x1xf32>
    %21 = vector.broadcast %20 : vector<4x1xf32> to vector<4x12xf32>
    %22 = arith.addf %19, %21 : vector<4x12xf32>
    %c0_17 = arith.constant 0 : index
    %c0_18 = arith.constant 0 : index
    %c0_19 = arith.constant 0 : index
    %23 = vector.load %arg13[%c0_17, %c0_18, %c0_19] : memref<1x4x12xf32, #tpu.memory_space<vmem>>, vector<1x4x12xf32>
    %24 = vector.shape_cast %23 : vector<1x4x12xf32> to vector<4x12xf32>
    %25 = vector.shape_cast %22 : vector<4x12xf32> to vector<1x4x12xf32>
    tpu.vector_store %arg13[%c0_17, %c0_18, %c0_19], %25 {strides = array<i32>} : memref<1x4x12xf32, #tpu.memory_space<vmem>>, vector<1x4x12xf32>,
    %c0_20 = arith.constant 0 : index
    %c0_21 = arith.constant 0 : index
    %26 = vector.load %arg11[%c0_20, %c0_21] : memref<16x8xf32, #tpu.memory_space<vmem>>, vector<16x8xf32>
    %cst_22 = arith.constant dense<0.000000e+00> : vector<4x8xf32>
    %27 = tpu.matmul %1, %26, %cst_22 {dimension_numbers = #tpu.dot_dimension_numbers<[1], [0], [0], [1], [0, 0, 1, 1], [], []>} : vector<4x16xf32>, vector<16x8xf32>, vector<4x8xf32> -> vector<4x8xf32>
    %28 = vector.extract_strided_slice %27 {offsets = [0, 0], sizes = [4, 4], strides = [1, 1]} : vector<4x8xf32> to vector<4x4xf32>
    %29 = vector.extract_strided_slice %27 {offsets = [0, 1], sizes = [4, 4], strides = [1, 1]} : vector<4x8xf32> to vector<4x4xf32>
    %30 = vector.extract_strided_slice %27 {offsets = [0, 2], sizes = [4, 4], strides = [1, 1]} : vector<4x8xf32> to vector<4x4xf32>
    %31 = vector.extract_strided_slice %27 {offsets = [0, 3], sizes = [4, 4], strides = [1, 1]} : vector<4x8xf32> to vector<4x4xf32>
    %32 = vector.extract_strided_slice %27 {offsets = [0, 4], sizes = [4, 4], strides = [1, 1]} : vector<4x8xf32> to vector<4x4xf32>
    %33 = tpu.concatenate %28, %29, %30, %31, %32 in 0 : vector<4x4xf32>, vector<4x4xf32>, vector<4x4xf32>, vector<4x4xf32>, vector<4x4xf32> -> vector<20x4xf32>
    %c0_23 = arith.constant 0 : index
    %c0_24 = arith.constant 0 : index
    %34 = vector.load %arg5[%c0_23, %c0_24] : memref<2x20xf32, #tpu.memory_space<vmem>>, vector<2x20xf32>
    %cst_25 = arith.constant dense<0.000000e+00> : vector<2x4xf32>
    %35 = tpu.matmul %34, %33, %cst_25 {dimension_numbers = #tpu.dot_dimension_numbers<[1], [0], [0], [1], [0, 0, 1, 1], [], []>} : vector<2x20xf32>, vector<20x4xf32>, vector<2x4xf32> -> vector<2x4xf32>
    %c0_26 = arith.constant 0 : index
    %c0_27 = arith.constant 0 : index
    %36 = vector.load %arg6[%c0_26, %c0_27] : memref<2x1xf32, #tpu.memory_space<vmem>>, vector<2x1xf32>
    %37 = vector.broadcast %36 : vector<2x1xf32> to vector<2x4xf32>
    %38 = arith.addf %35, %37 : vector<2x4xf32>
    %39 = vector.extract_strided_slice %3 {offsets = [0, 0], sizes = [2, 4], strides = [1, 1]} : vector<2x6xf32> to vector<2x4xf32>
    %40 = vector.extract_strided_slice %3 {offsets = [0, 1], sizes = [2, 4], strides = [1, 1]} : vector<2x6xf32> to vector<2x4xf32>
    %41 = vector.extract_strided_slice %3 {offsets = [0, 2], sizes = [2, 4], strides = [1, 1]} : vector<2x6xf32> to vector<2x4xf32>
    %42 = tpu.concatenate %39, %40, %41 in 0 : vector<2x4xf32>, vector<2x4xf32>, vector<2x4xf32> -> vector<6x4xf32>
    %c0_28 = arith.constant 0 : index
    %c0_29 = arith.constant 0 : index
    %43 = vector.load %arg7[%c0_28, %c0_29] : memref<2x6xf32, #tpu.memory_space<vmem>>, vector<2x6xf32>
    %cst_30 = arith.constant dense<0.000000e+00> : vector<2x4xf32>
    %44 = tpu.matmul %43, %42, %cst_30 {dimension_numbers = #tpu.dot_dimension_numbers<[1], [0], [0], [1], [0, 0, 1, 1], [], []>} : vector<2x6xf32>, vector<6x4xf32>, vector<2x4xf32> -> vector<2x4xf32>
    %45 = arith.addf %38, %44 : vector<2x4xf32>
    %c0_31 = arith.constant 0 : index
    %c0_32 = arith.constant 0 : index
    %46 = vector.load %arg8[%c0_31, %c0_32] : memref<2x1xf32, #tpu.memory_space<vmem>>, vector<2x1xf32>
    %47 = vector.broadcast %46 : vector<2x1xf32> to vector<2x4xf32>
    %48 = arith.addf %45, %47 : vector<2x4xf32>
    %c0_33 = arith.constant 0 : index
    %c0_34 = arith.constant 0 : index
    %c0_35 = arith.constant 0 : index
    %49 = vector.load %arg14[%c0_33, %c0_34, %c0_35] : memref<1x2x4xf32, #tpu.memory_space<vmem>>, vector<1x2x4xf32>
    %50 = vector.shape_cast %49 : vector<1x2x4xf32> to vector<2x4xf32>
    %51 = vector.shape_cast %48 : vector<2x4xf32> to vector<1x2x4xf32>
    tpu.vector_store %arg14[%c0_33, %c0_34, %c0_35], %51 {strides = array<i32>} : memref<1x2x4xf32, #tpu.memory_space<vmem>>, vector<1x2x4xf32>,
    return
  }
  func.func @transform_0(%arg0: i32) -> (i32, i32, i32) {
    %c0_i32 = arith.constant 0 : i32
    %c0_i32_0 = arith.constant 0 : i32
    %c0_i32_1 = arith.constant 0 : i32
    return %arg0, %c0_i32, %c0_i32_0 : i32, i32, i32
  }
  func.func @transform_1(%arg0: i32) -> (i32, i32, i32) {
    %c0_i32 = arith.constant 0 : i32
    %c0_i32_0 = arith.constant 0 : i32
    %c0_i32_1 = arith.constant 0 : i32
    return %arg0, %c0_i32, %c0_i32_0 : i32, i32, i32
  }
  func.func @transform_2(%arg0: i32) -> (i32, i32) {
    %c0_i32 = arith.constant 0 : i32
    %c0_i32_0 = arith.constant 0 : i32
    %c0_i32_1 = arith.constant 0 : i32
    return %c0_i32, %c0_i32_0 : i32, i32
  }
  func.func @transform_3(%arg0: i32) -> (i32, i32) {
    %c0_i32 = arith.constant 0 : i32
    %c0_i32_0 = arith.constant 0 : i32
    %c0_i32_1 = arith.constant 0 : i32
    return %c0_i32, %c0_i32_0 : i32, i32
  }
  func.func @transform_4(%arg0: i32) -> (i32, i32) {
    %c0_i32 = arith.constant 0 : i32
    %c0_i32_0 = arith.constant 0 : i32
    %c0_i32_1 = arith.constant 0 : i32
    return %c0_i32, %c0_i32_0 : i32, i32
  }
  func.func @transform_5(%arg0: i32) -> (i32, i32) {
    %c0_i32 = arith.constant 0 : i32
    %c0_i32_0 = arith.constant 0 : i32
    %c0_i32_1 = arith.constant 0 : i32
    return %c0_i32, %c0_i32_0 : i32, i32
  }
  func.func @transform_6(%arg0: i32) -> (i32, i32) {
    %c0_i32 = arith.constant 0 : i32
    %c0_i32_0 = arith.constant 0 : i32
    %c0_i32_1 = arith.constant 0 : i32
    return %c0_i32, %c0_i32_0 : i32, i32
  }
  func.func @transform_7(%arg0: i32) -> (i32, i32) {
    %c0_i32 = arith.constant 0 : i32
    %c0_i32_0 = arith.constant 0 : i32
    %c0_i32_1 = arith.constant 0 : i32
    return %c0_i32, %c0_i32_0 : i32, i32
  }
  func.func @transform_8(%arg0: i32) -> (i32, i32) {
    %c0_i32 = arith.constant 0 : i32
    %c0_i32_0 = arith.constant 0 : i32
    %c0_i32_1 = arith.constant 0 : i32
    return %c0_i32, %c0_i32_0 : i32, i32
  }
  func.func @transform_9(%arg0: i32) -> (i32, i32) {
    %c0_i32 = arith.constant 0 : i32
    %c0_i32_0 = arith.constant 0 : i32
    %c0_i32_1 = arith.constant 0 : i32
    return %c0_i32, %c0_i32_0 : i32, i32
  }
  func.func @transform_10(%arg0: i32) -> (i32, i32) {
    %c0_i32 = arith.constant 0 : i32
    %c0_i32_0 = arith.constant 0 : i32
    %c0_i32_1 = arith.constant 0 : i32
    return %c0_i32, %c0_i32_0 : i32, i32
  }
  func.func @transform_11(%arg0: i32) -> (i32, i32) {
    %c0_i32 = arith.constant 0 : i32
    %c0_i32_0 = arith.constant 0 : i32
    %c0_i32_1 = arith.constant 0 : i32
    return %c0_i32, %c0_i32_0 : i32, i32
  }
  func.func @transform_12(%arg0: i32) -> (i32, i32, i32) {
    %c0_i32 = arith.constant 0 : i32
    %c0_i32_0 = arith.constant 0 : i32
    %c0_i32_1 = arith.constant 0 : i32
    return %arg0, %c0_i32, %c0_i32_0 : i32, i32, i32
  }
  func.func @transform_13(%arg0: i32) -> (i32, i32, i32) {
    %c0_i32 = arith.constant 0 : i32
    %c0_i32_0 = arith.constant 0 : i32
    %c0_i32_1 = arith.constant 0 : i32
    return %arg0, %c0_i32, %c0_i32_0 : i32, i32, i32
  }
}

</mosaic_0001>

<llo_original>
// kernel: tpu_custom_call.1
$region0: #{tpu_custom_call.1}
  #allocation0 [shape = 'u32[]', space=smem, size = 0x4, offset = 0x4, fixed_abs, tag = 'smem constant byte address 0x4 - core index']
  #allocation1 [shape = 'u32[144,128]{1,0:T(1,128)}', space=vmem, size = 0x12000, scoped, tag = 'internal scratch']
  %s0 = inlined_call_operand.vmem [shape: f32[2,4,16], index: 0, kind: input, shape index: {}]
  %s1 = inlined_call_operand.vmem [shape: f32[2,2,6], index: 1, kind: input, shape index: {}]
  %s2 = inlined_call_operand.vmem [shape: f32[4,20], index: 2, kind: input, shape index: {}]
  %s3 = inlined_call_operand.vmem [shape: f32[4,1], index: 3, kind: input, shape index: {}]
  %s4 = inlined_call_operand.vmem [shape: f32[2,20], index: 4, kind: input, shape index: {}]
  %s5 = inlined_call_operand.vmem [shape: f32[2,1], index: 5, kind: input, shape index: {}]
  %s6 = inlined_call_operand.vmem [shape: f32[2,6], index: 6, kind: input, shape index: {}]
  %s7 = inlined_call_operand.vmem [shape: f32[2,1], index: 7, kind: input, shape index: {}]
  %s8 = inlined_call_operand.vmem [shape: f32[4,2], index: 8, kind: input, shape index: {}]
  %s9 = inlined_call_operand.vmem [shape: f32[4,1], index: 9, kind: input, shape index: {}]
  %s10 = inlined_call_operand.vmem [shape: f32[16,8], index: 10, kind: input, shape index: {}]
  %s11 = inlined_call_operand.vmem [shape: f32[6,12], index: 11, kind: input, shape index: {}]
  %s12 = inlined_call_operand.hbm [shape: f32[2,4,12], index: 12, kind: output, shape index: {0}]
  %s13 = inlined_call_operand.hbm [shape: f32[2,2,4], index: 13, kind: output, shape index: {1}]
  %14 = xla_tuple %s12, %s13
  %s15 = sld [smem:[#allocation0]]
  $region89: #{tpu_custom_call.1} parent=0
    _
  %s17 = ssub.s32 1, %s15
  %s18 = scalar_select 0, %s17, %s15
  $region1: #{tpu_custom_call.1} parent=0
    #allocation2 [shape = 'u8[4096]{0}', space=vmem, size = 0x1000, scoped, tag = 'output window, operand 0']
    #allocation3 [shape = 's32[2]{0}', space=sflag, size = 0x8, scoped, tag = 'scoped memory for tpu_custom_call.1']
    #allocation4 [shape = 'u8[2048]{0}', space=vmem, size = 0x800, scoped, tag = 'output window, operand 1']
    #allocation5 [shape = 's32[2]{0}', space=sflag, size = 0x8, scoped, tag = 'scoped memory for tpu_custom_call.1']
    %19 = vsyncpa [#allocation3], 0
    %s20 = scalar_lea.sflag [#allocation3], 1
    %21 = vsyncpa %s20, 0
    %22 = vsyncpa [#allocation5], 0
    %s23 = scalar_lea.sflag [#allocation5], 1
    %24 = vsyncpa %s23, 0
    loop: start=0, step=1, limit=4
    $region2: #{tpu_custom_call.1} parent=1 // loop_pre_header
      _
    $region3: #{tpu_custom_call.1} parent=1 // loop_header
      %s26 = sphi 0, %s30
      %p27 = scmp.ge.s32.totalorder %s26, 4
      %s36 = sphi 0, %s38
      %s39 = sphi 0, %s36
      %s40 = sphi 0, %s39
      %s56 = sphi 0, %s40
      %s62 = sphi 0, %s64
      %s65 = sphi 0, %s62
      %s66 = sphi 0, %s65
      %s82 = sphi 0, %s66
      %s86 = sphi 0, %s86
      %s88 = sphi 0, %s86
      %s89 = sphi 0, %s88
      %s103 = sphi 0, %s89
      %s107 = sphi 0, %s107
      %s109 = sphi 0, %s107
      %s110 = sphi 0, %s109
      %s124 = sphi 0, %s110
      %s128 = sphi 0, %s128
      %s130 = sphi 0, %s128
      %s131 = sphi 0, %s130
      %s145 = sphi 0, %s131
      %s149 = sphi 0, %s149
      %s151 = sphi 0, %s149
      %s152 = sphi 0, %s151
      %s166 = sphi 0, %s152
      %s170 = sphi 0, %s170
      %s172 = sphi 0, %s170
      %s173 = sphi 0, %s172
      %s187 = sphi 0, %s173
      %s191 = sphi 0, %s191
      %s193 = sphi 0, %s191
      %s194 = sphi 0, %s193
      %s208 = sphi 0, %s194
      %s212 = sphi 0, %s212
      %s214 = sphi 0, %s212
      %s215 = sphi 0, %s214
      %s229 = sphi 0, %s215
      %s233 = sphi 0, %s233
      %s235 = sphi 0, %s233
      %s236 = sphi 0, %s235
      %s250 = sphi 0, %s236
      %s254 = sphi 0, %s254
      %s256 = sphi 0, %s254
      %s257 = sphi 0, %s256
      %s271 = sphi 0, %s257
      %s275 = sphi 0, %s275
      %s277 = sphi 0, %s275
      %s278 = sphi 0, %s277
      %s292 = sphi 0, %s278
      %s298 = sphi 0, %s300
      %s301 = sphi 0, %s298
      %s302 = sphi 0, %s301
      %s318 = sphi 0, %s302
      %s324 = sphi 0, %s326
      %s327 = sphi 0, %s324
      %s328 = sphi 0, %s327
      %s344 = sphi 0, %s328
    $region4: #{tpu_custom_call.1} parent=1 // loop_header_branch
      %29 = sbr.rel (%p27) target = $region8
    $region5: #{tpu_custom_call.1} parent=1 // loop_body
      %s31 = ssub.s32 %s26, 1
      %s32 = ssub.s32 %s26, 2
      %s33 = sadd.s32 %s26, 1
      %s34 = ssub.s32 %s26, %s33
      %p35 = scmp.eq.s32.totalorder %s34, 0
      %s37 = sadd.s32 %s36, 1
      %s38 = scalar_select %p35, %s36, %s37
      %p41 = pneg %p35
      %p42 = scmp.eq.s32.totalorder %s26, 1
      %p43 = por %p41, %p42
      %p44 = scmp.ne.s32.totalorder %s36, %s39
      %p45 = scmp.eq.s32.totalorder %s26, 0
      %p46 = por %p44, %p45
      %p47 = scmp.ne.s32.totalorder %s36, %s39
      %p48 = scmp.eq.s32.totalorder %s31, 1
      %p49 = por %p47, %p48
      %p50 = scmp.ne.s32.totalorder %s39, %s40
      %p51 = scmp.eq.s32.totalorder %s31, 0
      %p52 = por %p50, %p51
      %p53 = scmp.ne.s32.totalorder %s39, %s40
      %p54 = scmp.eq.s32.totalorder %s32, 1
      %p55 = por %p53, %p54
      %p57 = scmp.ne.s32.totalorder %s40, %s56
      %p58 = scmp.eq.s32.totalorder %s32, 0
      %p59 = por %p57, %p58
      %s60 = ssub.s32 %s26, %s33
      %p61 = scmp.eq.s32.totalorder %s60, 0
      %s63 = sadd.s32 %s62, 1
      %s64 = scalar_select %p61, %s62, %s63
      %p67 = pneg %p61
      %p68 = scmp.eq.s32.totalorder %s26, 1
      %p69 = por %p67, %p68
      %p70 = scmp.ne.s32.totalorder %s62, %s65
      %p71 = scmp.eq.s32.totalorder %s26, 0
      %p72 = por %p70, %p71
      %p73 = scmp.ne.s32.totalorder %s62, %s65
      %p74 = scmp.eq.s32.totalorder %s31, 1
      %p75 = por %p73, %p74
      %p76 = scmp.ne.s32.totalorder %s65, %s66
      %p77 = scmp.eq.s32.totalorder %s31, 0
      %p78 = por %p76, %p77
      %p79 = scmp.ne.s32.totalorder %s65, %s66
      %p80 = scmp.eq.s32.totalorder %s32, 1
      %p81 = por %p79, %p80
      %p83 = scmp.ne.s32.totalorder %s66, %s82
      %p84 = scmp.eq.s32.totalorder %s32, 0
      %p85 = por %p83, %p84
      %s87 = sadd.s32 %s86, 1
      %p90 = scmp.eq.s32.totalorder %s26, 1
      %p91 = scmp.ne.s32.totalorder %s86, %s88
      %p92 = scmp.eq.s32.totalorder %s26, 0
      %p93 = por %p91, %p92
      %p94 = scmp.ne.s32.totalorder %s86, %s88
      %p95 = scmp.eq.s32.totalorder %s31, 1
      %p96 = por %p94, %p95
      %p97 = scmp.ne.s32.totalorder %s88, %s89
      %p98 = scmp.eq.s32.totalorder %s31, 0
      %p99 = por %p97, %p98
      %p100 = scmp.ne.s32.totalorder %s88, %s89
      %p101 = scmp.eq.s32.totalorder %s32, 1
      %p102 = por %p100, %p101
      %p104 = scmp.ne.s32.totalorder %s89, %s103
      %p105 = scmp.eq.s32.totalorder %s32, 0
      %p106 = por %p104, %p105
      %s108 = sadd.s32 %s107, 1
      %p111 = scmp.eq.s32.totalorder %s26, 1
      %p112 = scmp.ne.s32.totalorder %s107, %s109
      %p113 = scmp.eq.s32.totalorder %s26, 0
      %p114 = por %p112, %p113
      %p115 = scmp.ne.s32.totalorder %s107, %s109
      %p116 = scmp.eq.s32.totalorder %s31, 1
      %p117 = por %p115, %p116
      %p118 = scmp.ne.s32.totalorder %s109, %s110
      %p119 = scmp.eq.s32.totalorder %s31, 0
      %p120 = por %p118, %p119
      %p121 = scmp.ne.s32.totalorder %s109, %s110
      %p122 = scmp.eq.s32.totalorder %s32, 1
      %p123 = por %p121, %p122
      %p125 = scmp.ne.s32.totalorder %s110, %s124
      %p126 = scmp.eq.s32.totalorder %s32, 0
      %p127 = por %p125, %p126
      %s129 = sadd.s32 %s128, 1
      %p132 = scmp.eq.s32.totalorder %s26, 1
      %p133 = scmp.ne.s32.totalorder %s128, %s130
      %p134 = scmp.eq.s32.totalorder %s26, 0
      %p135 = por %p133, %p134
      %p136 = scmp.ne.s32.totalorder %s128, %s130
      %p137 = scmp.eq.s32.totalorder %s31, 1
      %p138 = por %p136, %p137
      %p139 = scmp.ne.s32.totalorder %s130, %s131
      %p140 = scmp.eq.s32.totalorder %s31, 0
      %p141 = por %p139, %p140
      %p142 = scmp.ne.s32.totalorder %s130, %s131
      %p143 = scmp.eq.s32.totalorder %s32, 1
      %p144 = por %p142, %p143
      %p146 = scmp.ne.s32.totalorder %s131, %s145
      %p147 = scmp.eq.s32.totalorder %s32, 0
      %p148 = por %p146, %p147
      %s150 = sadd.s32 %s149, 1
      %p153 = scmp.eq.s32.totalorder %s26, 1
      %p154 = scmp.ne.s32.totalorder %s149, %s151
      %p155 = scmp.eq.s32.totalorder %s26, 0
      %p156 = por %p154, %p155
      %p157 = scmp.ne.s32.totalorder %s149, %s151
      %p158 = scmp.eq.s32.totalorder %s31, 1
      %p159 = por %p157, %p158
      %p160 = scmp.ne.s32.totalorder %s151, %s152
      %p161 = scmp.eq.s32.totalorder %s31, 0
      %p162 = por %p160, %p161
      %p163 = scmp.ne.s32.totalorder %s151, %s152
      %p164 = scmp.eq.s32.totalorder %s32, 1
      %p165 = por %p163, %p164
      %p167 = scmp.ne.s32.totalorder %s152, %s166
      %p168 = scmp.eq.s32.totalorder %s32, 0
      %p169 = por %p167, %p168
      %s171 = sadd.s32 %s170, 1
      %p174 = scmp.eq.s32.totalorder %s26, 1
      %p175 = scmp.ne.s32.totalorder %s170, %s172
      %p176 = scmp.eq.s32.totalorder %s26, 0
      %p177 = por %p175, %p176
      %p178 = scmp.ne.s32.totalorder %s170, %s172
      %p179 = scmp.eq.s32.totalorder %s31, 1
      %p180 = por %p178, %p179
      %p181 = scmp.ne.s32.totalorder %s172, %s173
      %p182 = scmp.eq.s32.totalorder %s31, 0
      %p183 = por %p181, %p182
      %p184 = scmp.ne.s32.totalorder %s172, %s173
      %p185 = scmp.eq.s32.totalorder %s32, 1
      %p186 = por %p184, %p185
      %p188 = scmp.ne.s32.totalorder %s173, %s187
      %p189 = scmp.eq.s32.totalorder %s32, 0
      %p190 = por %p188, %p189
      %s192 = sadd.s32 %s191, 1
      %p195 = scmp.eq.s32.totalorder %s26, 1
      %p196 = scmp.ne.s32.totalorder %s191, %s193
      %p197 = scmp.eq.s32.totalorder %s26, 0
      %p198 = por %p196, %p197
      %p199 = scmp.ne.s32.totalorder %s191, %s193
      %p200 = scmp.eq.s32.totalorder %s31, 1
      %p201 = por %p199, %p200
      %p202 = scmp.ne.s32.totalorder %s193, %s194
      %p203 = scmp.eq.s32.totalorder %s31, 0
      %p204 = por %p202, %p203
      %p205 = scmp.ne.s32.totalorder %s193, %s194
      %p206 = scmp.eq.s32.totalorder %s32, 1
      %p207 = por %p205, %p206
      %p209 = scmp.ne.s32.totalorder %s194, %s208
      %p210 = scmp.eq.s32.totalorder %s32, 0
      %p211 = por %p209, %p210
      %s213 = sadd.s32 %s212, 1
      %p216 = scmp.eq.s32.totalorder %s26, 1
      %p217 = scmp.ne.s32.totalorder %s212, %s214
      %p218 = scmp.eq.s32.totalorder %s26, 0
      %p219 = por %p217, %p218
      %p220 = scmp.ne.s32.totalorder %s212, %s214
      %p221 = scmp.eq.s32.totalorder %s31, 1
      %p222 = por %p220, %p221
      %p223 = scmp.ne.s32.totalorder %s214, %s215
      %p224 = scmp.eq.s32.totalorder %s31, 0
      %p225 = por %p223, %p224
      %p226 = scmp.ne.s32.totalorder %s214, %s215
      %p227 = scmp.eq.s32.totalorder %s32, 1
      %p228 = por %p226, %p227
      %p230 = scmp.ne.s32.totalorder %s215, %s229
      %p231 = scmp.eq.s32.totalorder %s32, 0
      %p232 = por %p230, %p231
      %s234 = sadd.s32 %s233, 1
      %p237 = scmp.eq.s32.totalorder %s26, 1
      %p238 = scmp.ne.s32.totalorder %s233, %s235
      %p239 = scmp.eq.s32.totalorder %s26, 0
      %p240 = por %p238, %p239
      %p241 = scmp.ne.s32.totalorder %s233, %s235
      %p242 = scmp.eq.s32.totalorder %s31, 1
      %p243 = por %p241, %p242
      %p244 = scmp.ne.s32.totalorder %s235, %s236
      %p245 = scmp.eq.s32.totalorder %s31, 0
      %p246 = por %p244, %p245
      %p247 = scmp.ne.s32.totalorder %s235, %s236
      %p248 = scmp.eq.s32.totalorder %s32, 1
      %p249 = por %p247, %p248
      %p251 = scmp.ne.s32.totalorder %s236, %s250
      %p252 = scmp.eq.s32.totalorder %s32, 0
      %p253 = por %p251, %p252
      %s255 = sadd.s32 %s254, 1
      %p258 = scmp.eq.s32.totalorder %s26, 1
      %p259 = scmp.ne.s32.totalorder %s254, %s256
      %p260 = scmp.eq.s32.totalorder %s26, 0
      %p261 = por %p259, %p260
      %p262 = scmp.ne.s32.totalorder %s254, %s256
      %p263 = scmp.eq.s32.totalorder %s31, 1
      %p264 = por %p262, %p263
      %p265 = scmp.ne.s32.totalorder %s256, %s257
      %p266 = scmp.eq.s32.totalorder %s31, 0
      %p267 = por %p265, %p266
      %p268 = scmp.ne.s32.totalorder %s256, %s257
      %p269 = scmp.eq.s32.totalorder %s32, 1
      %p270 = por %p268, %p269
      %p272 = scmp.ne.s32.totalorder %s257, %s271
      %p273 = scmp.eq.s32.totalorder %s32, 0
      %p274 = por %p272, %p273
      %s276 = sadd.s32 %s275, 1
      %p279 = scmp.eq.s32.totalorder %s26, 1
      %p280 = scmp.ne.s32.totalorder %s275, %s277
      %p281 = scmp.eq.s32.totalorder %s26, 0
      %p282 = por %p280, %p281
      %p283 = scmp.ne.s32.totalorder %s275, %s277
      %p284 = scmp.eq.s32.totalorder %s31, 1
      %p285 = por %p283, %p284
      %p286 = scmp.ne.s32.totalorder %s277, %s278
      %p287 = scmp.eq.s32.totalorder %s31, 0
      %p288 = por %p286, %p287
      %p289 = scmp.ne.s32.totalorder %s277, %s278
      %p290 = scmp.eq.s32.totalorder %s32, 1
      %p291 = por %p289, %p290
      %p293 = scmp.ne.s32.totalorder %s278, %s292
      %p294 = scmp.eq.s32.totalorder %s32, 0
      %p295 = por %p293, %p294
      %s296 = ssub.s32 %s26, %s33
      %p297 = scmp.eq.s32.totalorder %s296, 0
      %s299 = sadd.s32 %s298, 1
      %s300 = scalar_select %p297, %s298, %s299
      %p303 = pneg %p297
      %p304 = scmp.eq.s32.totalorder %s26, 1
      %p305 = por %p303, %p304
      %p306 = scmp.ne.s32.totalorder %s298, %s301
      %p307 = scmp.eq.s32.totalorder %s26, 0
      %p308 = por %p306, %p307
      %p309 = scmp.ne.s32.totalorder %s298, %s301
      %p310 = scmp.eq.s32.totalorder %s31, 1
      %p311 = por %p309, %p310
      %p312 = scmp.ne.s32.totalorder %s301, %s302
      %p313 = scmp.eq.s32.totalorder %s31, 0
      %p314 = por %p312, %p313
      %p315 = scmp.ne.s32.totalorder %s301, %s302
      %p316 = scmp.eq.s32.totalorder %s32, 1
      %p317 = por %p315, %p316
      %p319 = scmp.ne.s32.totalorder %s302, %s318
      %p320 = scmp.eq.s32.totalorder %s32, 0
      %p321 = por %p319, %p320
      %s322 = ssub.s32 %s26, %s33
      %p323 = scmp.eq.s32.totalorder %s322, 0
      %s325 = sadd.s32 %s324, 1
      %s326 = scalar_select %p323, %s324, %s325
      %p329 = pneg %p323
      %p330 = scmp.eq.s32.totalorder %s26, 1
      %p331 = por %p329, %p330
      %p332 = scmp.ne.s32.totalorder %s324, %s327
      %p333 = scmp.eq.s32.totalorder %s26, 0
      %p334 = por %p332, %p333
      %p335 = scmp.ne.s32.totalorder %s324, %s327
      %p336 = scmp.eq.s32.totalorder %s31, 1
      %p337 = por %p335, %p336
      %p338 = scmp.ne.s32.totalorder %s327, %s328
      %p339 = scmp.eq.s32.totalorder %s31, 0
      %p340 = por %p338, %p339
      %p341 = scmp.ne.s32.totalorder %s327, %s328
      %p342 = scmp.eq.s32.totalorder %s32, 1
      %p343 = por %p341, %p342
      %p345 = scmp.ne.s32.totalorder %s328, %s344
      %p346 = scmp.eq.s32.totalorder %s32, 0
      %p347 = por %p345, %p346
      %p348 = scmp.le.s32.totalorder 1, %s26
      %p349 = scmp.lt.s32.totalorder %s26, 3
      %p350 = pnand %p348, %p349
      %p351 = pneg %p350
      // Predicated region
      $region9: #{tpu_custom_call.1} parent=5 // pred_check
        _
      $region10: #{tpu_custom_call.1} parent=5 // pred_check_branch
        %353 = sbr.rel (%p350) target = $region12
      $region11: #{tpu_custom_call.1} parent=5 // pred_region
        %s354 = ssub.s32 %s26, 1
        // Predicated region
        $region13: #{tpu_custom_call.1} parent=11 // pred_check
          %p355 = pneg %p99
        $region14: #{tpu_custom_call.1} parent=11 // pred_check_branch
          %357 = sbr.rel (%p355) target = $region16
        $region15: #{tpu_custom_call.1} parent=11 // pred_region
          _
        $region16: #{tpu_custom_call.1} parent=11 // pred_fallthru
          _
        // Predicated region
        $region17: #{tpu_custom_call.1} parent=11 // pred_check
          %p358 = pneg %p120
        $region18: #{tpu_custom_call.1} parent=11 // pred_check_branch
          %360 = sbr.rel (%p358) target = $region20
        $region19: #{tpu_custom_call.1} parent=11 // pred_region
          _
        $region20: #{tpu_custom_call.1} parent=11 // pred_fallthru
          _
        // Predicated region
        $region21: #{tpu_custom_call.1} parent=11 // pred_check
          %p361 = pneg %p141
        $region22: #{tpu_custom_call.1} parent=11 // pred_check_branch
          %363 = sbr.rel (%p361) target = $region24
        $region23: #{tpu_custom_call.1} parent=11 // pred_region
          _
        $region24: #{tpu_custom_call.1} parent=11 // pred_fallthru
          _
        // Predicated region
        $region25: #{tpu_custom_call.1} parent=11 // pred_check
          %p364 = pneg %p162
        $region26: #{tpu_custom_call.1} parent=11 // pred_check_branch
          %366 = sbr.rel (%p364) target = $region28
        $region27: #{tpu_custom_call.1} parent=11 // pred_region
          _
        $region28: #{tpu_custom_call.1} parent=11 // pred_fallthru
          _
        // Predicated region
        $region29: #{tpu_custom_call.1} parent=11 // pred_check
          %p367 = pneg %p183
        $region30: #{tpu_custom_call.1} parent=11 // pred_check_branch
          %369 = sbr.rel (%p367) target = $region32
        $region31: #{tpu_custom_call.1} parent=11 // pred_region
          _
        $region32: #{tpu_custom_call.1} parent=11 // pred_fallthru
          _
        // Predicated region
        $region33: #{tpu_custom_call.1} parent=11 // pred_check
          %p370 = pneg %p204
        $region34: #{tpu_custom_call.1} parent=11 // pred_check_branch
          %372 = sbr.rel (%p370) target = $region36
        $region35: #{tpu_custom_call.1} parent=11 // pred_region
          _
        $region36: #{tpu_custom_call.1} parent=11 // pred_fallthru
          _
        // Predicated region
        $region37: #{tpu_custom_call.1} parent=11 // pred_check
          %p373 = pneg %p225
        $region38: #{tpu_custom_call.1} parent=11 // pred_check_branch
          %375 = sbr.rel (%p373) target = $region40
        $region39: #{tpu_custom_call.1} parent=11 // pred_region
          _
        $region40: #{tpu_custom_call.1} parent=11 // pred_fallthru
          _
        // Predicated region
        $region41: #{tpu_custom_call.1} parent=11 // pred_check
          %p376 = pneg %p246
        $region42: #{tpu_custom_call.1} parent=11 // pred_check_branch
          %378 = sbr.rel (%p376) target = $region44
        $region43: #{tpu_custom_call.1} parent=11 // pred_region
          _
        $region44: #{tpu_custom_call.1} parent=11 // pred_fallthru
          _
        // Predicated region
        $region45: #{tpu_custom_call.1} parent=11 // pred_check
          %p379 = pneg %p267
        $region46: #{tpu_custom_call.1} parent=11 // pred_check_branch
          %381 = sbr.rel (%p379) target = $region48
        $region47: #{tpu_custom_call.1} parent=11 // pred_region
          _
        $region48: #{tpu_custom_call.1} parent=11 // pred_fallthru
          _
        // Predicated region
        $region49: #{tpu_custom_call.1} parent=11 // pred_check
          %p382 = pneg %p288
        $region50: #{tpu_custom_call.1} parent=11 // pred_check_branch
          %384 = sbr.rel (%p382) target = $region52
        $region51: #{tpu_custom_call.1} parent=11 // pred_region
          _
        $region52: #{tpu_custom_call.1} parent=11 // pred_fallthru
          _
      $region12: #{tpu_custom_call.1} parent=5 // pred_fallthru
        _
      %p385 = scmp.lt.s32.totalorder %s26, 2
      // Predicated region
      $region53: #{tpu_custom_call.1} parent=5 // pred_check
        %p386 = pneg %p385
      $region54: #{tpu_custom_call.1} parent=5 // pred_check_branch
        %388 = sbr.rel (%p386) target = $region56
      $region55: #{tpu_custom_call.1} parent=5 // pred_region
        // Predicated region
        $region57: #{tpu_custom_call.1} parent=55 // pred_check
          %p389 = pneg %p46
        $region58: #{tpu_custom_call.1} parent=55 // pred_check_branch
          %391 = sbr.rel (%p389) target = $region60
        $region59: #{tpu_custom_call.1} parent=55 // pred_region
          %p392 = scmp.lt.s32.totalorder %s26, 1
          %s393 = scalar_select %p392, %s26, 1
          %s394 = smul.addr %s393, 4
          %s395 = scalar_lea.vmem %s0, %s394
        $region60: #{tpu_custom_call.1} parent=55 // pred_fallthru
          _
        // Predicated region
        $region61: #{tpu_custom_call.1} parent=55 // pred_check
          %p396 = pneg %p72
        $region62: #{tpu_custom_call.1} parent=55 // pred_check_branch
          %398 = sbr.rel (%p396) target = $region64
        $region63: #{tpu_custom_call.1} parent=55 // pred_region
          %p399 = scmp.lt.s32.totalorder %s26, 1
          %s400 = scalar_select %p399, %s26, 1
          %s401 = smul.addr %s400, 2
          %s402 = scalar_lea.vmem %s1, %s401
        $region64: #{tpu_custom_call.1} parent=55 // pred_fallthru
          _
      $region56: #{tpu_custom_call.1} parent=5 // pred_fallthru
        _
      %p403 = scmp.le.s32.totalorder 1, %s26
      %p404 = scmp.lt.s32.totalorder %s26, 3
      %p405 = pnand %p403, %p404
      %p406 = pneg %p405
      // Predicated region
      $region65: #{tpu_custom_call.1} parent=5 // pred_check
        _
      $region66: #{tpu_custom_call.1} parent=5 // pred_check_branch
        %408 = sbr.rel (%p405) target = $region68
      $region67: #{tpu_custom_call.1} parent=5 // pred_region
        %s409 = ssub.s32 %s26, 1
        %p410 = scmp.lt.s32.totalorder %s31, 1
        %s411 = scalar_select %p410, %s31, 1
        %s412 = smul.addr %s411, 4
        %s413 = scalar_lea.vmem %s0, %s412
        %p414 = pneg %p52
        %p415 = pneg %p49
        %p416 = scmp.lt.s32.totalorder %s31, 1
        %s417 = scalar_select %p416, %s31, 1
        %s418 = smul.addr %s417, 2
        %s419 = scalar_lea.vmem %s1, %s418
        %p420 = pneg %p78
        %p421 = pneg %p75
        %p422 = pneg %p99
        %p423 = pneg %p96
        %p424 = pneg %p120
        %p425 = pneg %p117
        %p426 = pneg %p141
        %p427 = pneg %p138
        %p428 = pneg %p162
        %p429 = pneg %p159
        %p430 = pneg %p183
        %p431 = pneg %p180
        %p432 = pneg %p204
        %p433 = pneg %p201
        %p434 = pneg %p225
        %p435 = pneg %p222
        %p436 = pneg %p246
        %p437 = pneg %p243
        %p438 = pneg %p267
        %p439 = pneg %p264
        %p440 = pneg %p288
        %p441 = pneg %p285
        %p442 = pneg %p314
        %p443 = pneg %p311
        %s444 = sand.u32 %s301, 1
        %s445 = scalar_lea.sflag [#allocation3], %s444
        %s446 = sand.u32 %s301, 1
        %s447 = smul.addr %s446, 4
        %s448 = scalar_lea.vmem [#allocation2], %s447
        %p449 = pneg %p340
        %p450 = pneg %p337
        %s451 = sand.u32 %s327, 1
        %s452 = scalar_lea.sflag [#allocation5], %s451
        %s453 = sand.u32 %s327, 1
        %s454 = smul.addr %s453, 2
        %s455 = scalar_lea.vmem [#allocation4], %s454
        %p456 = scmp.lt.s32.totalorder %s31, 1
        %s457 = scalar_select %p456, %s31, 1
        %s458 = smul.addr %s457, 4
        %s459 = scalar_lea.vmem %s0, %s458
        %p460 = scmp.lt.s32.totalorder %s31, 1
        %s461 = scalar_select %p460, %s31, 1
        %s462 = smul.addr %s461, 2
        %s463 = scalar_lea.vmem %s1, %s462
        %v464 = vld [vmem:[%s459] sm:$0xf]
        %v465 = vld [vmem:[%s463] sm:$0x3]
        %v466 = vld [vmem:[%s8] sm:$0xf]
        %v467 = vld [vmem:[%s9] sm:$0xf]
        %469 = vset.pattern.permute.xlu0 0
        %470 = vperm.xlu0 %469, %v467
        %v471 = vpop.permute.xlu0 %470
        %vm473 = vcmask 15360
        %v475 = vsel %vm473, %v466, 0
        %vm477 = vcmask 1041408
        %v479 = vsel %vm477, %v465, 0
        %481 = vmatprep.subr.mxu0 0.0
        %482 = vmatpush1.msra.mxu0 %v479
        %483 = vmatprep.subr.mxu0 0.0
        %484 = vmatpush1.msra.mxu0 0.0
        %485 = vmatprep.subr.mxu0 0.0
        %486 = vmatpush1.msra.mxu0 0.0
        %487 = vmatprep.subr.mxu0 0.0
        %488 = vmatpush1.msra.mxu0 0.0
        %489 = vmatprep.subr.mxu0 0.0
        %490 = vmatpush1.msra.mxu0 0.0
        %491 = vmatprep.subr.mxu0 0.0
        %492 = vmatpush1.msra.mxu0 0.0
        %493 = vmatprep.subr.mxu0 0.0
        %494 = vmatpush1.msra.mxu0 0.0
        %495 = vmatprep.subr.mxu0 0.0
        %496 = vmatpush1.msra.mxu0 0.0
        %497 = vmatprep.subr.mxu0 0.0
        %498 = vmatpush1.msra.mxu0 0.0
        %499 = vmatprep.subr.mxu0 0.0
        %500 = vmatpush1.msra.mxu0 0.0
        %501 = vmatprep.subr.mxu0 0.0
        %502 = vmatpush1.msra.mxu0 0.0
        %503 = vmatprep.subr.mxu0 0.0
        %504 = vmatpush1.msra.mxu0 0.0
        %505 = vmatprep.subr.mxu0 0.0
        %506 = vmatpush1.msra.mxu0 0.0
        %507 = vmatprep.subr.mxu0 0.0
        %508 = vmatpush1.msra.mxu0 0.0
        %509 = vmatprep.subr.mxu0 0.0
        %510 = vmatpush1.msra.mxu0 0.0
        %511 = vmatprep.subr.mxu0 0.0
        %512 = vmatpush1.msra.mxu0 0.0
        %513 = vmatprep.subr.mxu0 0.0
        %514 = vmatpush1.msra.mxu0 0.0
        %515 = vmatprep.subr.mxu0 0.0
        %516 = vmatpush1.msra.mxu0 0.0
        %517 = vmatprep.subr.mxu0 0.0
        %518 = vmatpush1.msra.mxu0 0.0
        %519 = vmatprep.subr.mxu0 0.0
        %520 = vmatpush1.msra.mxu0 0.0
        %521 = vmatprep.subr.mxu0 0.0
        %522 = vmatpush1.msra.mxu0 0.0
        %523 = vmatprep.subr.mxu0 0.0
        %524 = vmatpush1.msra.mxu0 0.0
        %525 = vmatprep.subr.mxu0 0.0
        %526 = vmatpush1.msra.mxu0 0.0
        %527 = vmatprep.subr.mxu0 0.0
        %528 = vmatpush1.msra.mxu0 0.0
        %529 = vmatprep.subr.mxu0 0.0
        %530 = vmatpush1.msra.mxu0 0.0
        %531 = vmatprep.subr.mxu0 0.0
        %532 = vmatpush1.msra.mxu0 0.0
        %533 = vmatprep.subr.mxu0 0.0
        %534 = vmatpush1.msra.mxu0 0.0
        %535 = vmatprep.subr.mxu0 0.0
        %536 = vmatpush1.msra.mxu0 0.0
        %537 = vmatprep.subr.mxu0 0.0
        %538 = vmatpush1.msra.mxu0 0.0
        %539 = vmatprep.subr.mxu0 0.0
        %540 = vmatpush1.msra.mxu0 0.0
        %541 = vmatprep.subr.mxu0 0.0
        %542 = vmatpush1.msra.mxu0 0.0
        %543 = vmatprep.subr.mxu0 0.0
        %544 = vmatpush1.msra.mxu0 0.0
        %545 = vmatprep.mubr.f32.mxu0 0.0
        %546 = vmatmul.mubr.f32.gmra.mrb[0].mxu0 %v475
        %v547 = vpop.f32.mrb[0].mxu0
        %v548 = vadd.f32 %v471, %v547
        %v549 = vpop.f32.mrb[0].mxu0
        %550 = vdwg.mxu0
        %v551 = vld [vmem:[%s11] sm:$0x3f]
        %v553 = vrot.slane %v464, 4
        %554 = vrot.lane.b32.xlu0 %v553, 127
        %v555 = vpop.permute.xlu0 %554
        %557 = vrot.lane.b32.xlu0 %v464, 126
        %v558 = vpop.permute.xlu0 %557
        %560 = vrot.lane.b32.xlu0 %v553, 125
        %v561 = vpop.permute.xlu0 %560
        %563 = vrot.lane.b32.xlu0 %v464, 124
        %v564 = vpop.permute.xlu0 %563
        %vm565 = vcmask 1043456
        %v566 = vsel %vm565, %v464, %v555
        %v567 = vsel %vm565, %v558, %v561
        %v568 = vld [vmem:[%s2] sm:$0xf]
        %vm569 = vcmask 162816
        %v571 = vsel %vm569, %v568, 0
        %v573 = vsel %vm565, %v564, 0
        %575 = vmatprep.subr.mxu0 0.0
        %576 = vmatpush1.msra.mxu0 %v566
        %577 = vmatprep.subr.mxu0 0.0
        %578 = vmatpush1.msra.mxu0 %v567
        %579 = vmatprep.subr.mxu0 0.0
        %580 = vmatpush1.msra.mxu0 %v573
        %581 = vmatprep.subr.mxu0 0.0
        %582 = vmatpush1.msra.mxu0 0.0
        %583 = vmatprep.subr.mxu0 0.0
        %584 = vmatpush1.msra.mxu0 0.0
        %585 = vmatprep.subr.mxu0 0.0
        %586 = vmatpush1.msra.mxu0 0.0
        %587 = vmatprep.subr.mxu0 0.0
        %588 = vmatpush1.msra.mxu0 0.0
        %589 = vmatprep.subr.mxu0 0.0
        %590 = vmatpush1.msra.mxu0 0.0
        %591 = vmatprep.subr.mxu0 0.0
        %592 = vmatpush1.msra.mxu0 0.0
        %593 = vmatprep.subr.mxu0 0.0
        %594 = vmatpush1.msra.mxu0 0.0
        %595 = vmatprep.subr.mxu0 0.0
        %596 = vmatpush1.msra.mxu0 0.0
        %597 = vmatprep.subr.mxu0 0.0
        %598 = vmatpush1.msra.mxu0 0.0
        %599 = vmatprep.subr.mxu0 0.0
        %600 = vmatpush1.msra.mxu0 0.0
        %601 = vmatprep.subr.mxu0 0.0
        %602 = vmatpush1.msra.mxu0 0.0
        %603 = vmatprep.subr.mxu0 0.0
        %604 = vmatpush1.msra.mxu0 0.0
        %605 = vmatprep.subr.mxu0 0.0
        %606 = vmatpush1.msra.mxu0 0.0
        %607 = vmatprep.subr.mxu0 0.0
        %608 = vmatpush1.msra.mxu0 0.0
        %609 = vmatprep.subr.mxu0 0.0
        %610 = vmatpush1.msra.mxu0 0.0
        %611 = vmatprep.subr.mxu0 0.0
        %612 = vmatpush1.msra.mxu0 0.0
        %613 = vmatprep.subr.mxu0 0.0
        %614 = vmatpush1.msra.mxu0 0.0
        %615 = vmatprep.subr.mxu0 0.0
        %616 = vmatpush1.msra.mxu0 0.0
        %617 = vmatprep.subr.mxu0 0.0
        %618 = vmatpush1.msra.mxu0 0.0
        %619 = vmatprep.subr.mxu0 0.0
        %620 = vmatpush1.msra.mxu0 0.0
        %621 = vmatprep.subr.mxu0 0.0
        %622 = vmatpush1.msra.mxu0 0.0
        %623 = vmatprep.subr.mxu0 0.0
        %624 = vmatpush1.msra.mxu0 0.0
        %625 = vmatprep.subr.mxu0 0.0
        %626 = vmatpush1.msra.mxu0 0.0
        %627 = vmatprep.subr.mxu0 0.0
        %628 = vmatpush1.msra.mxu0 0.0
        %629 = vmatprep.subr.mxu0 0.0
        %630 = vmatpush1.msra.mxu0 0.0
        %631 = vmatprep.subr.mxu0 0.0
        %632 = vmatpush1.msra.mxu0 0.0
        %633 = vmatprep.subr.mxu0 0.0
        %634 = vmatpush1.msra.mxu0 0.0
        %635 = vmatprep.subr.mxu0 0.0
        %636 = vmatpush1.msra.mxu0 0.0
        %637 = vmatprep.subr.mxu0 0.0
        %638 = vmatpush1.msra.mxu0 0.0
        %639 = vmatprep.mubr.f32.mxu0 0.0
        %640 = vmatmul.mubr.f32.gmra.mrb[0].mxu0 %v571
        %v641 = vpop.f32.mrb[0].mxu0
        %v642 = vadd.f32 0.0, %v641
        %v643 = vpop.f32.mrb[0].mxu0
        %644 = vdwg.mxu0
        %vm645 = vcmask 48128
        %v647 = vsel %vm645, %v548, 0
        %vm649 = vcmask 1045504
        %v651 = vsel %vm649, %v551, 0
        %653 = vmatprep.subr.mxu0 0.0
        %654 = vmatpush1.msra.mxu0 %v651
        %655 = vmatprep.subr.mxu0 0.0
        %656 = vmatpush1.msra.mxu0 0.0
        %657 = vmatprep.subr.mxu0 0.0
        %658 = vmatpush1.msra.mxu0 0.0
        %659 = vmatprep.subr.mxu0 0.0
        %660 = vmatpush1.msra.mxu0 0.0
        %661 = vmatprep.subr.mxu0 0.0
        %662 = vmatpush1.msra.mxu0 0.0
        %663 = vmatprep.subr.mxu0 0.0
        %664 = vmatpush1.msra.mxu0 0.0
        %665 = vmatprep.subr.mxu0 0.0
        %666 = vmatpush1.msra.mxu0 0.0
        %667 = vmatprep.subr.mxu0 0.0
        %668 = vmatpush1.msra.mxu0 0.0
        %669 = vmatprep.subr.mxu0 0.0
        %670 = vmatpush1.msra.mxu0 0.0
        %671 = vmatprep.subr.mxu0 0.0
        %672 = vmatpush1.msra.mxu0 0.0
        %673 = vmatprep.subr.mxu0 0.0
        %674 = vmatpush1.msra.mxu0 0.0
        %675 = vmatprep.subr.mxu0 0.0
        %676 = vmatpush1.msra.mxu0 0.0
        %677 = vmatprep.subr.mxu0 0.0
        %678 = vmatpush1.msra.mxu0 0.0
        %679 = vmatprep.subr.mxu0 0.0
        %680 = vmatpush1.msra.mxu0 0.0
        %681 = vmatprep.subr.mxu0 0.0
        %682 = vmatpush1.msra.mxu0 0.0
        %683 = vmatprep.subr.mxu0 0.0
        %684 = vmatpush1.msra.mxu0 0.0
        %685 = vmatprep.subr.mxu0 0.0
        %686 = vmatpush1.msra.mxu0 0.0
        %687 = vmatprep.subr.mxu0 0.0
        %688 = vmatpush1.msra.mxu0 0.0
        %689 = vmatprep.subr.mxu0 0.0
        %690 = vmatpush1.msra.mxu0 0.0
        %691 = vmatprep.subr.mxu0 0.0
        %692 = vmatpush1.msra.mxu0 0.0
        %693 = vmatprep.subr.mxu0 0.0
        %694 = vmatpush1.msra.mxu0 0.0
        %695 = vmatprep.subr.mxu0 0.0
        %696 = vmatpush1.msra.mxu0 0.0
        %697 = vmatprep.subr.mxu0 0.0
        %698 = vmatpush1.msra.mxu0 0.0
        %699 = vmatprep.subr.mxu0 0.0
        %700 = vmatpush1.msra.mxu0 0.0
        %701 = vmatprep.subr.mxu0 0.0
        %702 = vmatpush1.msra.mxu0 0.0
        %703 = vmatprep.subr.mxu0 0.0
        %704 = vmatpush1.msra.mxu0 0.0
        %705 = vmatprep.subr.mxu0 0.0
        %706 = vmatpush1.msra.mxu0 0.0
        %707 = vmatprep.subr.mxu0 0.0
        %708 = vmatpush1.msra.mxu0 0.0
        %709 = vmatprep.subr.mxu0 0.0
        %710 = vmatpush1.msra.mxu0 0.0
        %711 = vmatprep.subr.mxu0 0.0
        %712 = vmatpush1.msra.mxu0 0.0
        %713 = vmatprep.subr.mxu0 0.0
        %714 = vmatpush1.msra.mxu0 0.0
        %715 = vmatprep.subr.mxu0 0.0
        %716 = vmatpush1.msra.mxu0 0.0
        %717 = vmatprep.mubr.f32.mxu0 0.0
        %718 = vmatmul.mubr.f32.gmra.mrb[0].mxu0 %v647
        %v719 = vpop.f32.mrb[0].mxu0
        %v720 = vadd.f32 %v642, %v719
        %v721 = vpop.f32.mrb[0].mxu0
        %722 = vdwg.mxu0
        %v723 = vld [vmem:[%s3] sm:$0xf]
        %725 = vset.pattern.permute.xlu0 0
        %726 = vperm.xlu0 %725, %v723
        %v727 = vpop.permute.xlu0 %726
        %v729 = vadd.f32 %v720, %v727
        %vm730 = vcmask 93184
        %731 = vst.msk [vmem:[%s448] sm:$0xf] %vm730, %v729
        %v732 = vld [vmem:[%s10] sm:$0xff]
        %v733 = vld [vmem:[%s10 + $0x8] sm:$0xff]
        %vm734 = vcmask 130048
        %v735 = vsel %vm734, %v464, 0
        %737 = vmatprep.subr.mxu0 0.0
        %738 = vmatpush1.msra.mxu0 %v732
        %739 = vmatprep.subr.mxu0 0.0
        %740 = vmatpush1.msra.mxu0 %v733
        %741 = vmatprep.subr.mxu0 0.0
        %742 = vmatpush1.msra.mxu0 0.0
        %743 = vmatprep.subr.mxu0 0.0
        %744 = vmatpush1.msra.mxu0 0.0
        %745 = vmatprep.subr.mxu0 0.0
        %746 = vmatpush1.msra.mxu0 0.0
        %747 = vmatprep.subr.mxu0 0.0
        %748 = vmatpush1.msra.mxu0 0.0
        %749 = vmatprep.subr.mxu0 0.0
        %750 = vmatpush1.msra.mxu0 0.0
        %751 = vmatprep.subr.mxu0 0.0
        %752 = vmatpush1.msra.mxu0 0.0
        %753 = vmatprep.subr.mxu0 0.0
        %754 = vmatpush1.msra.mxu0 0.0
        %755 = vmatprep.subr.mxu0 0.0
        %756 = vmatpush1.msra.mxu0 0.0
        %757 = vmatprep.subr.mxu0 0.0
        %758 = vmatpush1.msra.mxu0 0.0
        %759 = vmatprep.subr.mxu0 0.0
        %760 = vmatpush1.msra.mxu0 0.0
        %761 = vmatprep.subr.mxu0 0.0
        %762 = vmatpush1.msra.mxu0 0.0
        %763 = vmatprep.subr.mxu0 0.0
        %764 = vmatpush1.msra.mxu0 0.0
        %765 = vmatprep.subr.mxu0 0.0
        %766 = vmatpush1.msra.mxu0 0.0
        %767 = vmatprep.subr.mxu0 0.0
        %768 = vmatpush1.msra.mxu0 0.0
        %769 = vmatprep.subr.mxu0 0.0
        %770 = vmatpush1.msra.mxu0 0.0
        %771 = vmatprep.subr.mxu0 0.0
        %772 = vmatpush1.msra.mxu0 0.0
        %773 = vmatprep.subr.mxu0 0.0
        %774 = vmatpush1.msra.mxu0 0.0
        %775 = vmatprep.subr.mxu0 0.0
        %776 = vmatpush1.msra.mxu0 0.0
        %777 = vmatprep.subr.mxu0 0.0
        %778 = vmatpush1.msra.mxu0 0.0
        %779 = vmatprep.subr.mxu0 0.0
        %780 = vmatpush1.msra.mxu0 0.0
        %781 = vmatprep.subr.mxu0 0.0
        %782 = vmatpush1.msra.mxu0 0.0
        %783 = vmatprep.subr.mxu0 0.0
        %784 = vmatpush1.msra.mxu0 0.0
        %785 = vmatprep.subr.mxu0 0.0
        %786 = vmatpush1.msra.mxu0 0.0
        %787 = vmatprep.subr.mxu0 0.0
        %788 = vmatpush1.msra.mxu0 0.0
        %789 = vmatprep.subr.mxu0 0.0
        %790 = vmatpush1.msra.mxu0 0.0
        %791 = vmatprep.subr.mxu0 0.0
        %792 = vmatpush1.msra.mxu0 0.0
        %793 = vmatprep.subr.mxu0 0.0
        %794 = vmatpush1.msra.mxu0 0.0
        %795 = vmatprep.subr.mxu0 0.0
        %796 = vmatpush1.msra.mxu0 0.0
        %797 = vmatprep.subr.mxu0 0.0
        %798 = vmatpush1.msra.mxu0 0.0
        %799 = vmatprep.subr.mxu0 0.0
        %800 = vmatpush1.msra.mxu0 0.0
        %801 = vmatprep.mubr.f32.mxu0 0.0
        %802 = vmatmul.mubr.f32.gmra.mrb[0].mxu0 %v735
        %v803 = vpop.f32.mrb[0].mxu0
        %v804 = vadd.f32 0.0, %v803
        %v805 = vpop.f32.mrb[0].mxu0
        %806 = vdwg.mxu0
        %v808 = vrot.slane %v804, 4
        %809 = vrot.lane.b32.xlu0 %v808, 127
        %v810 = vpop.permute.xlu0 %809
        %812 = vrot.lane.b32.xlu0 %v804, 126
        %v813 = vpop.permute.xlu0 %812
        %815 = vrot.lane.b32.xlu0 %v808, 125
        %v816 = vpop.permute.xlu0 %815
        %818 = vrot.lane.b32.xlu0 %v804, 124
        %v819 = vpop.permute.xlu0 %818
        %v820 = vsel %vm565, %v804, %v810
        %v821 = vsel %vm565, %v813, %v816
        %v822 = vld [vmem:[%s4] sm:$0x3]
        %v823 = vld [vmem:[%s5] sm:$0x3]
        %825 = vset.pattern.permute.xlu0 0
        %826 = vperm.xlu0 %825, %v823
        %v827 = vpop.permute.xlu0 %826
        %v830 = vsel %vm569, %v822, 0
        %v832 = vsel %vm565, %v819, 0
        %834 = vmatprep.subr.mxu0 0.0
        %835 = vmatpush1.msra.mxu0 %v820
        %836 = vmatprep.subr.mxu0 0.0
        %837 = vmatpush1.msra.mxu0 %v821
        %838 = vmatprep.subr.mxu0 0.0
        %839 = vmatpush1.msra.mxu0 %v832
        %840 = vmatprep.subr.mxu0 0.0
        %841 = vmatpush1.msra.mxu0 0.0
        %842 = vmatprep.subr.mxu0 0.0
        %843 = vmatpush1.msra.mxu0 0.0
        %844 = vmatprep.subr.mxu0 0.0
        %845 = vmatpush1.msra.mxu0 0.0
        %846 = vmatprep.subr.mxu0 0.0
        %847 = vmatpush1.msra.mxu0 0.0
        %848 = vmatprep.subr.mxu0 0.0
        %849 = vmatpush1.msra.mxu0 0.0
        %850 = vmatprep.subr.mxu0 0.0
        %851 = vmatpush1.msra.mxu0 0.0
        %852 = vmatprep.subr.mxu0 0.0
        %853 = vmatpush1.msra.mxu0 0.0
        %854 = vmatprep.subr.mxu0 0.0
        %855 = vmatpush1.msra.mxu0 0.0
        %856 = vmatprep.subr.mxu0 0.0
        %857 = vmatpush1.msra.mxu0 0.0
        %858 = vmatprep.subr.mxu0 0.0
        %859 = vmatpush1.msra.mxu0 0.0
        %860 = vmatprep.subr.mxu0 0.0
        %861 = vmatpush1.msra.mxu0 0.0
        %862 = vmatprep.subr.mxu0 0.0
        %863 = vmatpush1.msra.mxu0 0.0
        %864 = vmatprep.subr.mxu0 0.0
        %865 = vmatpush1.msra.mxu0 0.0
        %866 = vmatprep.subr.mxu0 0.0
        %867 = vmatpush1.msra.mxu0 0.0
        %868 = vmatprep.subr.mxu0 0.0
        %869 = vmatpush1.msra.mxu0 0.0
        %870 = vmatprep.subr.mxu0 0.0
        %871 = vmatpush1.msra.mxu0 0.0
        %872 = vmatprep.subr.mxu0 0.0
        %873 = vmatpush1.msra.mxu0 0.0
        %874 = vmatprep.subr.mxu0 0.0
        %875 = vmatpush1.msra.mxu0 0.0
        %876 = vmatprep.subr.mxu0 0.0
        %877 = vmatpush1.msra.mxu0 0.0
        %878 = vmatprep.subr.mxu0 0.0
        %879 = vmatpush1.msra.mxu0 0.0
        %880 = vmatprep.subr.mxu0 0.0
        %881 = vmatpush1.msra.mxu0 0.0
        %882 = vmatprep.subr.mxu0 0.0
        %883 = vmatpush1.msra.mxu0 0.0
        %884 = vmatprep.subr.mxu0 0.0
        %885 = vmatpush1.msra.mxu0 0.0
        %886 = vmatprep.subr.mxu0 0.0
        %887 = vmatpush1.msra.mxu0 0.0
        %888 = vmatprep.subr.mxu0 0.0
        %889 = vmatpush1.msra.mxu0 0.0
        %890 = vmatprep.subr.mxu0 0.0
        %891 = vmatpush1.msra.mxu0 0.0
        %892 = vmatprep.subr.mxu0 0.0
        %893 = vmatpush1.msra.mxu0 0.0
        %894 = vmatprep.subr.mxu0 0.0
        %895 = vmatpush1.msra.mxu0 0.0
        %896 = vmatprep.subr.mxu0 0.0
        %897 = vmatpush1.msra.mxu0 0.0
        %898 = vmatprep.mubr.f32.mxu0 0.0
        %899 = vmatmul.mubr.f32.gmra.mrb[0].mxu0 %v830
        %v900 = vpop.f32.mrb[0].mxu0
        %v901 = vadd.f32 %v827, %v900
        %v902 = vpop.f32.mrb[0].mxu0
        %903 = vdwg.mxu0
        %v904 = vrot.slane %v465, 6
        %905 = vrot.lane.b32.xlu0 %v904, 127
        %v906 = vpop.permute.xlu0 %905
        %v908 = vrot.slane %v465, 4
        %909 = vrot.lane.b32.xlu0 %v908, 126
        %v910 = vpop.permute.xlu0 %909
        %v912 = vsel %vm477, %v465, %v906
        %v913 = vsel %vm565, %v912, %v910
        %v914 = vld [vmem:[%s6] sm:$0x3]
        %v916 = vsel %vm645, %v914, 0
        %v919 = vsel %vm649, %v913, 0
        %921 = vmatprep.subr.mxu0 0.0
        %922 = vmatpush1.msra.mxu0 %v919
        %923 = vmatprep.subr.mxu0 0.0
        %924 = vmatpush1.msra.mxu0 0.0
        %925 = vmatprep.subr.mxu0 0.0
        %926 = vmatpush1.msra.mxu0 0.0
        %927 = vmatprep.subr.mxu0 0.0
        %928 = vmatpush1.msra.mxu0 0.0
        %929 = vmatprep.subr.mxu0 0.0
        %930 = vmatpush1.msra.mxu0 0.0
        %931 = vmatprep.subr.mxu0 0.0
        %932 = vmatpush1.msra.mxu0 0.0
        %933 = vmatprep.subr.mxu0 0.0
        %934 = vmatpush1.msra.mxu0 0.0
        %935 = vmatprep.subr.mxu0 0.0
        %936 = vmatpush1.msra.mxu0 0.0
        %937 = vmatprep.subr.mxu0 0.0
        %938 = vmatpush1.msra.mxu0 0.0
        %939 = vmatprep.subr.mxu0 0.0
        %940 = vmatpush1.msra.mxu0 0.0
        %941 = vmatprep.subr.mxu0 0.0
        %942 = vmatpush1.msra.mxu0 0.0
        %943 = vmatprep.subr.mxu0 0.0
        %944 = vmatpush1.msra.mxu0 0.0
        %945 = vmatprep.subr.mxu0 0.0
        %946 = vmatpush1.msra.mxu0 0.0
        %947 = vmatprep.subr.mxu0 0.0
        %948 = vmatpush1.msra.mxu0 0.0
        %949 = vmatprep.subr.mxu0 0.0
        %950 = vmatpush1.msra.mxu0 0.0
        %951 = vmatprep.subr.mxu0 0.0
        %952 = vmatpush1.msra.mxu0 0.0
        %953 = vmatprep.subr.mxu0 0.0
        %954 = vmatpush1.msra.mxu0 0.0
        %955 = vmatprep.subr.mxu0 0.0
        %956 = vmatpush1.msra.mxu0 0.0
        %957 = vmatprep.subr.mxu0 0.0
        %958 = vmatpush1.msra.mxu0 0.0
        %959 = vmatprep.subr.mxu0 0.0
        %960 = vmatpush1.msra.mxu0 0.0
        %961 = vmatprep.subr.mxu0 0.0
        %962 = vmatpush1.msra.mxu0 0.0
        %963 = vmatprep.subr.mxu0 0.0
        %964 = vmatpush1.msra.mxu0 0.0
        %965 = vmatprep.subr.mxu0 0.0
        %966 = vmatpush1.msra.mxu0 0.0
        %967 = vmatprep.subr.mxu0 0.0
        %968 = vmatpush1.msra.mxu0 0.0
        %969 = vmatprep.subr.mxu0 0.0
        %970 = vmatpush1.msra.mxu0 0.0
        %971 = vmatprep.subr.mxu0 0.0
        %972 = vmatpush1.msra.mxu0 0.0
        %973 = vmatprep.subr.mxu0 0.0
        %974 = vmatpush1.msra.mxu0 0.0
        %975 = vmatprep.subr.mxu0 0.0
        %976 = vmatpush1.msra.mxu0 0.0
        %977 = vmatprep.subr.mxu0 0.0
        %978 = vmatpush1.msra.mxu0 0.0
        %979 = vmatprep.subr.mxu0 0.0
        %980 = vmatpush1.msra.mxu0 0.0
        %981 = vmatprep.subr.mxu0 0.0
        %982 = vmatpush1.msra.mxu0 0.0
        %983 = vmatprep.subr.mxu0 0.0
        %984 = vmatpush1.msra.mxu0 0.0
        %985 = vmatprep.mubr.f32.mxu0 0.0
        %986 = vmatmul.mubr.f32.gmra.mrb[0].mxu0 %v916
        %v987 = vpop.f32.mrb[0].mxu0
        %v988 = vadd.f32 0.0, %v987
        %v989 = vpop.f32.mrb[0].mxu0
        %990 = vdwg.mxu0
        %v991 = vadd.f32 %v901, %v988
        %v992 = vld [vmem:[%s7] sm:$0x3]
        %994 = vset.pattern.permute.xlu0 0
        %995 = vperm.xlu0 %994, %v992
        %v996 = vpop.permute.xlu0 %995
        %v998 = vadd.f32 %v991, %v996
        %vm999 = vcmask 25600
        %1000 = vst.msk [vmem:[%s455] sm:$0x3] %vm999, %v998
        %s1001 = sand.u32 %s301, 1
        %s1002 = scalar_lea.sflag [#allocation3], %s1001
        %s1003 = sand.u32 %s301, 1
        %s1004 = smul.addr %s1003, 4
        %s1005 = scalar_lea.vmem [#allocation2], %s1004
        %s1006 = sand.u32 %s327, 1
        %s1007 = scalar_lea.sflag [#allocation5], %s1006
        %s1008 = sand.u32 %s327, 1
        %s1009 = smul.addr %s1008, 2
        %s1010 = scalar_lea.vmem [#allocation4], %s1009
        // Predicated region
        $region69: #{tpu_custom_call.1} parent=67 // pred_check
          %p1011 = pneg %p311
        $region70: #{tpu_custom_call.1} parent=67 // pred_check_branch
          %1013 = sbr.rel (%p1011) target = $region72
        $region71: #{tpu_custom_call.1} parent=67 // pred_region
          %s1015 = ssub.s32 64, 64
          %1016 = vsyncadd %s1002, %s1015
          %s1017 = smul.addr %s31, 64
          %s1018 = scalar_lea.hbm %s12, %s1017
          %s1020 = sshll.u32 %s1005, 4
          %s1021 = int_to_ptr.vmem [resolvable:$true] %s1020
          %1023 = dma.vmem_to_hbm [thread:$0]  %s1021, 64, %s1018, %s1002
        $region72: #{tpu_custom_call.1} parent=67 // pred_fallthru
          _
        // Predicated region
        $region73: #{tpu_custom_call.1} parent=67 // pred_check
          %p1024 = pneg %p337
        $region74: #{tpu_custom_call.1} parent=67 // pred_check_branch
          %1026 = sbr.rel (%p1024) target = $region76
        $region75: #{tpu_custom_call.1} parent=67 // pred_region
          %s1028 = ssub.s32 32, 32
          %1029 = vsyncadd %s1007, %s1028
          %s1030 = smul.addr %s31, 32
          %s1031 = scalar_lea.hbm %s13, %s1030
          %s1033 = sshll.u32 %s1010, 4
          %s1034 = int_to_ptr.vmem [resolvable:$true] %s1033
          %1036 = dma.vmem_to_hbm [thread:$0]  %s1034, 32, %s1031, %s1007
        $region76: #{tpu_custom_call.1} parent=67 // pred_fallthru
          _
      $region68: #{tpu_custom_call.1} parent=5 // pred_fallthru
        _
      %p1037 = scmp.le.s32.totalorder 2, %s26
      // Predicated region
      $region77: #{tpu_custom_call.1} parent=5 // pred_check
        %p1038 = pneg %p1037
      $region78: #{tpu_custom_call.1} parent=5 // pred_check_branch
        %1040 = sbr.rel (%p1038) target = $region80
      $region79: #{tpu_custom_call.1} parent=5 // pred_region
        %s1041 = ssub.s32 %s26, 2
        // Predicated region
        $region81: #{tpu_custom_call.1} parent=79 // pred_check
          %p1042 = pneg %p317
        $region82: #{tpu_custom_call.1} parent=79 // pred_check_branch
          %1044 = sbr.rel (%p1042) target = $region84
        $region83: #{tpu_custom_call.1} parent=79 // pred_region
          %s1045 = sand.u32 %s302, 1
          %s1046 = scalar_lea.sflag [#allocation3], %s1045
          %s1047 = sand.u32 %s302, 1
          %s1048 = smul.addr %s1047, 4
          %s1049 = scalar_lea.vmem [#allocation2], %s1048
          %1050 = dma.done %s1046, 64
        $region84: #{tpu_custom_call.1} parent=79 // pred_fallthru
          _
        // Predicated region
        $region85: #{tpu_custom_call.1} parent=79 // pred_check
          %p1051 = pneg %p343
        $region86: #{tpu_custom_call.1} parent=79 // pred_check_branch
          %1053 = sbr.rel (%p1051) target = $region88
        $region87: #{tpu_custom_call.1} parent=79 // pred_region
          %s1054 = sand.u32 %s328, 1
          %s1055 = scalar_lea.sflag [#allocation5], %s1054
          %s1056 = sand.u32 %s328, 1
          %s1057 = smul.addr %s1056, 2
          %s1058 = scalar_lea.vmem [#allocation4], %s1057
          %1059 = dma.done %s1055, 32
        $region88: #{tpu_custom_call.1} parent=79 // pred_fallthru
          _
      $region80: #{tpu_custom_call.1} parent=5 // pred_fallthru
        _
    $region6: #{tpu_custom_call.1} parent=1 // loop_footer
      %s30 = sadd.s32 1, %s26
    $region7: #{tpu_custom_call.1} parent=1 // loop_footer_branch
      %25 = sbr.rel target = $region3
    $region8: #{tpu_custom_call.1} parent=1 // loop_exit
      _
    %1060 = vsyncpa [#allocation3], 1
    %s1061 = scalar_lea.sflag [#allocation3], 1
    %1062 = vsyncpa %s1061, 1
    %1063 = vsyncpa [#allocation5], 1
    %s1064 = scalar_lea.sflag [#allocation5], 1
    %1065 = vsyncpa %s1064, 1

</llo_original>
